<compile_context>
chip_gen: v5e
topology: v5e:2x2
jax: 0.10.0
libtpu: 0.0.40
codegen_flags: <defaults>
</compile_context>

<pallas_src>
import functools

import jax
import jax.numpy as jnp
from jax import lax
from jax.experimental import pallas as pl
from jax.experimental.pallas import tpu as pltpu


# ----------------------------------------------------------------------------
# Path A: embedding table resident in VMEM (small / medium vocab).
# ----------------------------------------------------------------------------
def _sbpr_resident_kernel(seq_smem, nxt_smem,     # scalar prefetch (SMEM): (Bp*L,), (Bp,)
                          table_vmem,             # (Vp, Dp) table, resident in VMEM
                          out_ref,                # (1, TB) f32 lane-dense scores
                          sess_ref, next_ref,     # scratch: (TB, Dp) f32 each
                          *, L):
    i = pl.program_id(0)
    TB, Dp = sess_ref.shape

    @pl.loop(0, TB)
    def _gather(r):
        gb = i * TB + r
        acc = jnp.zeros((1, Dp), jnp.float32)
        nnz = jnp.float32(0.0)
        for l in range(L):                        # static, small unroll
            sid = seq_smem[gb * L + l]
            valid = (sid != 0).astype(jnp.float32)
            acc = acc + table_vmem[pl.ds(sid, 1), :].astype(jnp.float32) * valid
            nnz = nnz + valid
        # Fold 1/nnz into the per-row session embedding (guard all-pad rows).
        sess_ref[pl.ds(r, 1), :] = acc / jnp.maximum(nnz, 1.0)
        nid = nxt_smem[gb]
        next_ref[pl.ds(r, 1), :] = table_vmem[pl.ds(nid, 1), :].astype(jnp.float32)

    scores = jnp.sum(sess_ref[...] * next_ref[...], axis=-1)      # (TB,)
    out_ref[...] = scores.reshape(1, TB)                          # lane-dense store


# ----------------------------------------------------------------------------
# Path B: table in HBM, manual row-gather DMAs (large vocab).
# ----------------------------------------------------------------------------
def _sbpr_hbm_gather_kernel(seq_smem, nxt_smem,   # scalar prefetch (SMEM)
                            seq_vmem, table_hbm,  # (TB, L) ids in VMEM; (Vp, Dp) in HBM
                            out_ref,              # (1, TB) f32
                            rows_vmem, next_vmem, # (L*TB, Dp), (TB, Dp) in table dtype
                            copy_sem):            # scalar DMA semaphore
    i = pl.program_id(0)
    TB, L = seq_vmem.shape
    Dp = next_vmem.shape[1]
    zero_row = jnp.zeros((1, Dp), dtype=rows_vmem.dtype)

    def issue_row(r, n_seq):
        gb = i * TB + r
        # Next-item row: always fetched (id 0 only occurs for batch-padding rows,
        # whose scores are sliced off by the wrapper; row 0 is a valid table row).
        pltpu.make_async_copy(table_hbm.at[pl.ds(nxt_smem[gb], 1), :],
                              next_vmem.at[pl.ds(r, 1), :], copy_sem).start()
        for l in range(L):                        # static, small
            sid = seq_smem[gb * L + l]
            slot = l * TB + r

            @pl.when(sid != 0)                    # skip HBM DMA for padding ids
            def _fetch():
                pltpu.make_async_copy(table_hbm.at[pl.ds(sid, 1), :],
                                      rows_vmem.at[pl.ds(slot, 1), :],
                                      copy_sem).start()

            @pl.when(sid == 0)                    # cheap VMEM zero-store instead
            def _zero():
                rows_vmem[pl.ds(slot, 1), :] = zero_row

            n_seq = n_seq + (sid != 0).astype(jnp.int32)
        return n_seq

    n_seq = lax.fori_loop(0, TB, issue_row, jnp.int32(0), unroll=4)

    # Per-row nonzero counts from the VMEM id tile, computed before any DMA wait.
    nnz = jnp.maximum(jnp.sum((seq_vmem[...] != 0).astype(jnp.float32), axis=1), 1.0)

    # All copies are identically sized (one Dp-wide row of the table dtype), so a
    # same-shaped descriptor waits for exactly one completion on the shared sem.
    @pl.loop(0, TB)                               # next-item rows (always TB of them)
    def _wait_next(_):
        pltpu.make_async_copy(table_hbm.at[pl.ds(0, 1), :],
                              next_vmem.at[pl.ds(0, 1), :], copy_sem).wait()

    @pl.loop(0, n_seq)                            # session rows actually fetched
    def _wait_rows(_):
        pltpu.make_async_copy(table_hbm.at[pl.ds(0, 1), :],
                              rows_vmem.at[pl.ds(0, 1), :], copy_sem).wait()

    # Session sum: L statically-sliced (TB, Dp) planes (no reshape, no mask mult;
    # skipped padding rows were zero-stored above).
    sess = jnp.zeros((TB, Dp), jnp.float32)
    for l in range(L):
        sess = sess + rows_vmem[pl.ds(l * TB, TB), :].astype(jnp.float32)

    scores = jnp.sum(sess * next_vmem[...].astype(jnp.float32), axis=-1) / nnz
    out_ref[...] = scores.reshape(1, TB)


# ----------------------------------------------------------------------------
# Wrapper
# ----------------------------------------------------------------------------
def prepare_item_embedding_table(item_embed_table, dtype=jnp.float32):
    """Pad/cast the (item_num+1, D) table ONCE, outside the per-call path:
    rows to a multiple of 8 (sublanes), columns to a multiple of 128 (lanes).
    Padded entries are zero, so scores are unchanged.  Pass dtype=jnp.bfloat16
    to halve HBM gather traffic / VMEM footprint (kernels upcast to f32)."""
    V1, D = item_embed_table.shape
    Dp = max(128, ((D + 127) // 128) * 128)
    Vp = ((V1 + 7) // 8) * 8
    t = item_embed_table.astype(dtype)
    return jnp.pad(t, ((0, Vp - V1), (0, Dp - D)))


def sbpr_forward(item_seq, next_item, table, *, batch_tile=128,
                 resident_table_budget_bytes=16 * 2**20, force_path=None):
    """item_seq (B, L) int, next_item (B,) int, table from prepare_item_embedding_table.
    Returns (B,) float32 scores.  force_path in {None, "resident", "hbm"}."""
    B, L = item_seq.shape
    Vp, Dp = table.shape
    if Dp % 128 != 0 or Vp % 8 != 0:              # convenience fallback
        table = prepare_item_embedding_table(table, table.dtype)
        Vp, Dp = table.shape

    TB = batch_tile
    Bp = ((B + TB - 1) // TB) * TB
    num_tiles = Bp // TB

    seq2d = jnp.pad(item_seq.astype(jnp.int32), ((0, Bp - B), (0, 0)))
    seq_flat = seq2d.reshape(-1)                  # 1-D SMEM prefetch (avoids 2-D SMEM pad)
    nxt = jnp.pad(next_item.reshape(-1).astype(jnp.int32), (0, Bp - B))

    itemsize = jnp.dtype(table.dtype).itemsize
    table_bytes = Vp * Dp * itemsize
    if force_path is None:
        resident = table_bytes <= resident_table_budget_bytes
    else:
        resident = (force_path == "resident")

    out_spec = pl.BlockSpec((1, TB), lambda i, seq_ref, nxt_ref: (i, 0))
    out_shape = jax.ShapeDtypeStruct((num_tiles, TB), jnp.float32)

    if resident:
        kernel = functools.partial(_sbpr_resident_kernel, L=L)
        in_specs = [pl.BlockSpec((Vp, Dp), lambda i, seq_ref, nxt_ref: (0, 0))]
        scratch = [pltpu.VMEM((TB, Dp), jnp.float32),
                   pltpu.VMEM((TB, Dp), jnp.float32)]
        args = (seq_flat, nxt, table)
        bytes_accessed = table_bytes + 4 * (Bp * L + 2 * Bp)
        need = 2 * table_bytes + 2 * TB * Dp * 4 + (2 << 20)
    else:
        kernel = _sbpr_hbm_gather_kernel
        in_specs = [pl.BlockSpec((TB, L), lambda i, seq_ref, nxt_ref: (i, 0)),
                    pl.BlockSpec(memory_space=pl.ANY)]   # table stays in HBM
        scratch = [pltpu.VMEM((L * TB, Dp), table.dtype),
                   pltpu.VMEM((TB, Dp), table.dtype),
                   pltpu.SemaphoreType.DMA(())]
        args = (seq_flat, nxt, seq2d, table)
        bytes_accessed = Bp * (L + 1) * Dp * itemsize + 4 * (Bp * L + 2 * Bp)
        need = 2 * (L + 1) * TB * Dp * itemsize + (8 << 20)

    vmem_limit = int(min(max(need, 32 * 2**20), 128 * 2**20))

    grid_spec = pltpu.PrefetchScalarGridSpec(
        num_scalar_prefetch=2,                    # seq ids, next ids -> SMEM
        grid=(num_tiles,),
        in_specs=in_specs,
        out_specs=out_spec,
        scratch_shapes=scratch)

    out = pl.pallas_call(
        kernel,
        out_shape=out_shape,
        grid_spec=grid_spec,
        compiler_params=pltpu.CompilerParams(
            dimension_semantics=("parallel",),
            vmem_limit_bytes=vmem_limit),
        cost_estimate=pl.CostEstimate(
            flops=int(2 * Bp * (L + 1) * Dp),
            transcendentals=0,
            bytes_accessed=int(bytes_accessed)),
    )(*args)

    return out.reshape(-1)[:B]


# ----------------------------------------------------------------------------
# Reference / test
# ----------------------------------------------------------------------------
def make_item_embedding(key, item_num, embedding_dim):
    """nn.Embedding(item_num + 1, D, padding_idx=0), normal(0, 0.05), row 0 zeroed."""
    w = 0.05 * jax.random.normal(key, (item_num + 1, embedding_dim), dtype=jnp.float32)
    return w.at[0].set(0.0)


def sbpr_reference(item_embed, item_seq, next_item):
    sess_items_embed = item_embed[item_seq]                        # (B, L, D)
    nnz = jnp.count_nonzero(item_seq, axis=1).reshape(-1, 1)
    sess_embed = jnp.sum(sess_items_embed, axis=1) / nnz
    return jnp.sum(sess_embed * item_embed[next_item], axis=-1)


if __name__ == "__main__":
    item_num = 50
    embedding_dim = 32
    max_len = 8
    batch = 2

    key = jax.random.PRNGKey(0)
    k_emb, k_seq, k_next = jax.random.split(key, 3)

    item_embed = make_item_embedding(k_emb, item_num, embedding_dim)

    # sessions: nonzero item ids, right-padded with 0 (padding idx)
    seq = jax.random.randint(k_seq, (batch, max_len), 1, item_num + 1, dtype=jnp.int32)
    pad_mask = jnp.arange(max_len)[None, :] < jnp.array([[5], [8]])   # lengths 5 and 8
    item_seq = jnp.where(pad_mask, seq, 0)
    next_item = jax.random.randint(k_next, (batch,), 1, item_num + 1, dtype=jnp.int32)

    table = prepare_item_embedding_table(item_embed)   # pad once, outside per-call path
    ref = sbpr_reference(item_embed, item_seq, next_item)

    # Exercise both paths (small table -> resident would be auto-chosen; force both).
    for path in ("resident", "hbm"):
        score = jax.block_until_ready(
            sbpr_forward(item_seq, next_item, table, force_path=path))
        assert score.shape == (batch,), (path, score.shape)
        assert jnp.allclose(score, ref, atol=1e-5, rtol=1e-5), (path, score, ref)

    print("KERNEL_OK")
</pallas_src>

<mosaic_0001>
module attributes {stable_mosaic.version = 11 : i64} {
  func.func @_sbpr_resident_kernel(%arg0: i32, %arg1: memref<1024xi32, #tpu.memory_space<smem>>, %arg2: memref<128xi32, #tpu.memory_space<smem>>, %arg3: memref<56x128xf32, #tpu.memory_space<vmem>>, %arg4: memref<1x128xf32, #tpu.memory_space<vmem>>, %arg5: memref<128x128xf32, #tpu.memory_space<vmem>>, %arg6: memref<128x128xf32, #tpu.memory_space<vmem>>) attributes {dimension_semantics = [#tpu.dimension_semantics<parallel>], iteration_bounds = array<i64: 1>, scalar_prefetch = 2 : i64, scratch_operands = 2 : i64, tpu.core_type = #tpu.core_type<tc>, window_params = [{pipeline_mode = #tpu.pipeline_mode<synchronous>, transform_indices = @transform_0, window_bounds = array<i64: 56, 128>}, {transform_indices = @transform_1, window_bounds = array<i64: 1, 128>}]} {
    %c0_i32 = arith.constant 0 : i32
    %c128_i32 = arith.constant 128 : i32
    %0 = arith.addi %c0_i32, %c128_i32 : i32
    %c1_i32 = arith.constant 1 : i32
    scf.for %arg7 = %c0_i32 to %0 step %c1_i32  : i32 {
      %c1_i32_6 = arith.constant 1 : i32
      %7 = arith.muli %arg7, %c1_i32_6 : i32
      %c0_i32_7 = arith.constant 0 : i32
      %8 = arith.addi %c0_i32_7, %7 : i32
      %c128_i32_8 = arith.constant 128 : i32
      %9 = arith.muli %arg0, %c128_i32_8 : i32
      %10 = arith.addi %9, %8 : i32
      %cst_9 = arith.constant 0.000000e+00 : f32
      %11 = vector.broadcast %cst_9 : f32 to vector<1x128xf32>
      %c8_i32 = arith.constant 8 : i32
      %12 = arith.muli %10, %c8_i32 : i32
      %c0_i32_10 = arith.constant 0 : i32
      %13 = arith.addi %12, %c0_i32_10 : i32
      %14 = arith.index_cast %13 : i32 to index
      %15 = memref.load %arg1[%14] : memref<1024xi32, #tpu.memory_space<smem>>
      %c0_i32_11 = arith.constant 0 : i32
      %16 = arith.cmpi ne, %15, %c0_i32_11 : i32
      %17 = arith.extui %16 : i1 to i32
      %18 = arith.sitofp %17 : i32 to f32
      %19 = arith.index_cast %15 : i32 to index
      %c0_12 = arith.constant 0 : index
      %20 = vector.load %arg3[%19, %c0_12] : memref<56x128xf32, #tpu.memory_space<vmem>>, vector<1x128xf32>
      %21 = vector.broadcast %18 : f32 to vector<1x128xf32>
      %22 = arith.mulf %20, %21 : vector<1x128xf32>
      %23 = arith.addf %11, %22 : vector<1x128xf32>
      %cst_13 = arith.constant 0.000000e+00 : f32
      %24 = arith.addf %cst_13, %18 : f32
      %c8_i32_14 = arith.constant 8 : i32
      %25 = arith.muli %10, %c8_i32_14 : i32
      %c1_i32_15 = arith.constant 1 : i32
      %26 = arith.addi %25, %c1_i32_15 : i32
      %27 = arith.index_cast %26 : i32 to index
      %28 = memref.load %arg1[%27] : memref<1024xi32, #tpu.memory_space<smem>>
      %c0_i32_16 = arith.constant 0 : i32
      %29 = arith.cmpi ne, %28, %c0_i32_16 : i32
      %30 = arith.extui %29 : i1 to i32
      %31 = arith.sitofp %30 : i32 to f32
      %32 = arith.index_cast %28 : i32 to index
      %c0_17 = arith.constant 0 : index
      %33 = vector.load %arg3[%32, %c0_17] : memref<56x128xf32, #tpu.memory_space<vmem>>, vector<1x128xf32>
      %34 = vector.broadcast %31 : f32 to vector<1x128xf32>
      %35 = arith.mulf %33, %34 : vector<1x128xf32>
      %36 = arith.addf %23, %35 : vector<1x128xf32>
      %37 = arith.addf %24, %31 : f32
      %c8_i32_18 = arith.constant 8 : i32
      %38 = arith.muli %10, %c8_i32_18 : i32
      %c2_i32 = arith.constant 2 : i32
      %39 = arith.addi %38, %c2_i32 : i32
      %40 = arith.index_cast %39 : i32 to index
      %41 = memref.load %arg1[%40] : memref<1024xi32, #tpu.memory_space<smem>>
      %c0_i32_19 = arith.constant 0 : i32
      %42 = arith.cmpi ne, %41, %c0_i32_19 : i32
      %43 = arith.extui %42 : i1 to i32
      %44 = arith.sitofp %43 : i32 to f32
      %45 = arith.index_cast %41 : i32 to index
      %c0_20 = arith.constant 0 : index
      %46 = vector.load %arg3[%45, %c0_20] : memref<56x128xf32, #tpu.memory_space<vmem>>, vector<1x128xf32>
      %47 = vector.broadcast %44 : f32 to vector<1x128xf32>
      %48 = arith.mulf %46, %47 : vector<1x128xf32>
      %49 = arith.addf %36, %48 : vector<1x128xf32>
      %50 = arith.addf %37, %44 : f32
      %c8_i32_21 = arith.constant 8 : i32
      %51 = arith.muli %10, %c8_i32_21 : i32
      %c3_i32 = arith.constant 3 : i32
      %52 = arith.addi %51, %c3_i32 : i32
      %53 = arith.index_cast %52 : i32 to index
      %54 = memref.load %arg1[%53] : memref<1024xi32, #tpu.memory_space<smem>>
      %c0_i32_22 = arith.constant 0 : i32
      %55 = arith.cmpi ne, %54, %c0_i32_22 : i32
      %56 = arith.extui %55 : i1 to i32
      %57 = arith.sitofp %56 : i32 to f32
      %58 = arith.index_cast %54 : i32 to index
      %c0_23 = arith.constant 0 : index
      %59 = vector.load %arg3[%58, %c0_23] : memref<56x128xf32, #tpu.memory_space<vmem>>, vector<1x128xf32>
      %60 = vector.broadcast %57 : f32 to vector<1x128xf32>
      %61 = arith.mulf %59, %60 : vector<1x128xf32>
      %62 = arith.addf %49, %61 : vector<1x128xf32>
      %63 = arith.addf %50, %57 : f32
      %c8_i32_24 = arith.constant 8 : i32
      %64 = arith.muli %10, %c8_i32_24 : i32
      %c4_i32 = arith.constant 4 : i32
      %65 = arith.addi %64, %c4_i32 : i32
      %66 = arith.index_cast %65 : i32 to index
      %67 = memref.load %arg1[%66] : memref<1024xi32, #tpu.memory_space<smem>>
      %c0_i32_25 = arith.constant 0 : i32
      %68 = arith.cmpi ne, %67, %c0_i32_25 : i32
      %69 = arith.extui %68 : i1 to i32
      %70 = arith.sitofp %69 : i32 to f32
      %71 = arith.index_cast %67 : i32 to index
      %c0_26 = arith.constant 0 : index
      %72 = vector.load %arg3[%71, %c0_26] : memref<56x128xf32, #tpu.memory_space<vmem>>, vector<1x128xf32>
      %73 = vector.broadcast %70 : f32 to vector<1x128xf32>
      %74 = arith.mulf %72, %73 : vector<1x128xf32>
      %75 = arith.addf %62, %74 : vector<1x128xf32>
      %76 = arith.addf %63, %70 : f32
      %c8_i32_27 = arith.constant 8 : i32
      %77 = arith.muli %10, %c8_i32_27 : i32
      %c5_i32 = arith.constant 5 : i32
      %78 = arith.addi %77, %c5_i32 : i32
      %79 = arith.index_cast %78 : i32 to index
      %80 = memref.load %arg1[%79] : memref<1024xi32, #tpu.memory_space<smem>>
      %c0_i32_28 = arith.constant 0 : i32
      %81 = arith.cmpi ne, %80, %c0_i32_28 : i32
      %82 = arith.extui %81 : i1 to i32
      %83 = arith.sitofp %82 : i32 to f32
      %84 = arith.index_cast %80 : i32 to index
      %c0_29 = arith.constant 0 : index
      %85 = vector.load %arg3[%84, %c0_29] : memref<56x128xf32, #tpu.memory_space<vmem>>, vector<1x128xf32>
      %86 = vector.broadcast %83 : f32 to vector<1x128xf32>
      %87 = arith.mulf %85, %86 : vector<1x128xf32>
      %88 = arith.addf %75, %87 : vector<1x128xf32>
      %89 = arith.addf %76, %83 : f32
      %c8_i32_30 = arith.constant 8 : i32
      %90 = arith.muli %10, %c8_i32_30 : i32
      %c6_i32 = arith.constant 6 : i32
      %91 = arith.addi %90, %c6_i32 : i32
      %92 = arith.index_cast %91 : i32 to index
      %93 = memref.load %arg1[%92] : memref<1024xi32, #tpu.memory_space<smem>>
      %c0_i32_31 = arith.constant 0 : i32
      %94 = arith.cmpi ne, %93, %c0_i32_31 : i32
      %95 = arith.extui %94 : i1 to i32
      %96 = arith.sitofp %95 : i32 to f32
      %97 = arith.index_cast %93 : i32 to index
      %c0_32 = arith.constant 0 : index
      %98 = vector.load %arg3[%97, %c0_32] : memref<56x128xf32, #tpu.memory_space<vmem>>, vector<1x128xf32>
      %99 = vector.broadcast %96 : f32 to vector<1x128xf32>
      %100 = arith.mulf %98, %99 : vector<1x128xf32>
      %101 = arith.addf %88, %100 : vector<1x128xf32>
      %102 = arith.addf %89, %96 : f32
      %c8_i32_33 = arith.constant 8 : i32
      %103 = arith.muli %10, %c8_i32_33 : i32
      %c7_i32 = arith.constant 7 : i32
      %104 = arith.addi %103, %c7_i32 : i32
      %105 = arith.index_cast %104 : i32 to index
      %106 = memref.load %arg1[%105] : memref<1024xi32, #tpu.memory_space<smem>>
      %c0_i32_34 = arith.constant 0 : i32
      %107 = arith.cmpi ne, %106, %c0_i32_34 : i32
      %108 = arith.extui %107 : i1 to i32
      %109 = arith.sitofp %108 : i32 to f32
      %110 = arith.index_cast %106 : i32 to index
      %c0_35 = arith.constant 0 : index
      %111 = vector.load %arg3[%110, %c0_35] : memref<56x128xf32, #tpu.memory_space<vmem>>, vector<1x128xf32>
      %112 = vector.broadcast %109 : f32 to vector<1x128xf32>
      %113 = arith.mulf %111, %112 : vector<1x128xf32>
      %114 = arith.addf %101, %113 : vector<1x128xf32>
      %115 = arith.addf %102, %109 : f32
      %cst_36 = arith.constant 1.000000e+00 : f32
      %116 = arith.maximumf %115, %cst_36 : f32
      %117 = vector.broadcast %116 : f32 to vector<1x128xf32>
      %118 = arith.divf %114, %117 : vector<1x128xf32>
      %119 = arith.index_cast %8 : i32 to index
      %c0_37 = arith.constant 0 : index
      %120 = vector.load %arg5[%119, %c0_37] : memref<128x128xf32, #tpu.memory_space<vmem>>, vector<1x128xf32>
      tpu.vector_store %arg5[%119, %c0_37], %118 {strides = array<i32>} : memref<128x128xf32, #tpu.memory_space<vmem>>, vector<1x128xf32>,
      %121 = arith.index_cast %10 : i32 to index
      %122 = memref.load %arg2[%121] : memref<128xi32, #tpu.memory_space<smem>>
      %123 = arith.index_cast %122 : i32 to index
      %c0_38 = arith.constant 0 : index
      %124 = vector.load %arg3[%123, %c0_38] : memref<56x128xf32, #tpu.memory_space<vmem>>, vector<1x128xf32>
      %125 = arith.index_cast %8 : i32 to index
      %c0_39 = arith.constant 0 : index
      %126 = vector.load %arg6[%125, %c0_39] : memref<128x128xf32, #tpu.memory_space<vmem>>, vector<1x128xf32>
      tpu.vector_store %arg6[%125, %c0_39], %124 {strides = array<i32>} : memref<128x128xf32, #tpu.memory_space<vmem>>, vector<1x128xf32>,
    }
    %c128_i32_0 = arith.constant 128 : i32
    %c0 = arith.constant 0 : index
    %c0_1 = arith.constant 0 : index
    %1 = vector.load %arg5[%c0, %c0_1] : memref<128x128xf32, #tpu.memory_space<vmem>>, vector<128x128xf32>
    %c0_2 = arith.constant 0 : index
    %c0_3 = arith.constant 0 : index
    %2 = vector.load %arg6[%c0_2, %c0_3] : memref<128x128xf32, #tpu.memory_space<vmem>>, vector<128x128xf32>
    %3 = arith.mulf %1, %2 : vector<128x128xf32>
    %cst = arith.constant dense<0.000000e+00> : vector<128xf32>
    %4 = vector.multi_reduction <add>, %3, %cst [1] : vector<128x128xf32> to vector<128xf32>
    %5 = vector.shape_cast %4 : vector<128xf32> to vector<1x128xf32>
    %c0_4 = arith.constant 0 : index
    %c0_5 = arith.constant 0 : index
    %6 = vector.load %arg4[%c0_4, %c0_5] : memref<1x128xf32, #tpu.memory_space<vmem>>, vector<1x128xf32>
    tpu.vector_store %arg4[%c0_4, %c0_5], %5 {strides = array<i32>} : memref<1x128xf32, #tpu.memory_space<vmem>>, vector<1x128xf32>,
    return
  }
  func.func @transform_0(%arg0: i32, %arg1: memref<1024xi32, #tpu.memory_space<smem>>, %arg2: memref<128xi32, #tpu.memory_space<smem>>) -> (i32, i32) {
    %c0_i32 = arith.constant 0 : i32
    %c0_i32_0 = arith.constant 0 : i32
    %c0_i32_1 = arith.constant 0 : i32
    return %c0_i32, %c0_i32_0 : i32, i32
  }
  func.func @transform_1(%arg0: i32, %arg1: memref<1024xi32, #tpu.memory_space<smem>>, %arg2: memref<128xi32, #tpu.memory_space<smem>>) -> (i32, i32) {
    %c0_i32 = arith.constant 0 : i32
    %c0_i32_0 = arith.constant 0 : i32
    return %arg0, %c0_i32 : i32, i32
  }
}

</mosaic_0001>

<llo_original>
// kernel: tpu_custom_call.1
$region0: #{tpu_custom_call.1}
  #allocation0 [shape = 'u32[]', space=smem, size = 0x4, offset = 0x4, fixed_abs, tag = 'smem constant byte address 0x4 - core index']
  #allocation1 [shape = 'u32[72,128]{1,0:T(1,128)}', space=vmem, size = 0x9000, scoped, tag = 'internal scratch']
  #allocation2 [shape = 'f32[128,128]{1,0:T(8,128)}', space=vmem, size = 0x10000, scoped, tag = 'scratch operand']
  #allocation3 [shape = 'f32[128,128]{1,0:T(8,128)}', space=vmem, size = 0x10000, scoped, tag = 'scratch operand']
  #allocation4 [shape = 's32[1]{0}', space=sflag, size = 0x4, scoped, tag = 'scoped memory for tpu_custom_call.1']
  #allocation5 [shape = 'u8[4096]{0}', space=smem, size = 0x1000, scoped, tag = 'prefetched SMEM operand 0']
  #allocation6 [shape = 'u8[512]{0}', space=smem, size = 0x200, scoped, tag = 'prefetched SMEM operand 1']
  %s0 = inlined_call_operand.hbm [shape: s32[1024], index: 0, kind: input, shape index: {}]
  %s1 = inlined_call_operand.hbm [shape: s32[128], index: 1, kind: input, shape index: {}]
  %s2 = inlined_call_operand.hbm [shape: f32[56,128], index: 2, kind: input, shape index: {}]
  %s3 = inlined_call_operand.hbm [shape: f32[1,128], index: 3, kind: output, shape index: {}]
  %s4 = sld [smem:[#allocation0]]
  $region25: #{tpu_custom_call.1} parent=0
    _
  %s6 = ssub.s32 1, %s4
  %s7 = scalar_select 0, %s6, %s4
  %s9 = sshll.u32 %s0, 4
  %s10 = int_to_ptr.hbm [resolvable:$true] %s9
  %12 = dma.hbm_to_smem %s10, 128, [#allocation5], [#allocation4]
  %s14 = sshll.u32 %s1, 4
  %s15 = int_to_ptr.hbm [resolvable:$true] %s14
  %17 = dma.hbm_to_smem %s15, 16, [#allocation6], [#allocation4]
  %19 = dma.done [#allocation4], 144
  %20 = sfence
  $region1: #{tpu_custom_call.1} parent=0
    #allocation7 [shape = 'u8[28672]{0}', space=vmem, size = 0x7000, scoped, tag = 'input window, operand 2, single buffered']
    #allocation8 [shape = 's32[1]{0}', space=sflag, size = 0x4, scoped, tag = 'scoped memory for tpu_custom_call.1']
    #allocation9 [shape = 's32[1]{0}', space=sflag, size = 0x4, scoped, tag = 'scoped memory for tpu_custom_call.1']
    #allocation10 [shape = 'u8[512]{0}', space=vmem, size = 0x400, scoped, tag = 'output window, operand 0, single buffered']
    %21 = vsyncpa [#allocation8], 0
    %22 = vsyncpa [#allocation9], 0
    // Predicated region
    $region2: #{tpu_custom_call.1} parent=1 // pred_check
      _
    $region3: #{tpu_custom_call.1} parent=1 // pred_check_branch
      %24 = sbr.rel (0) target = $region5
    $region4: #{tpu_custom_call.1} parent=1 // pred_region
      %26 = vsyncadd [#allocation8], 0
      %s27 = sshll.u32 %s2, 4
      %s28 = int_to_ptr.hbm [resolvable:$true] %s27
      %s29 = sshll.u32 [#allocation7], 4
      %s30 = int_to_ptr.vmem [resolvable:$true] %s29
      %35 = dma.hbm_to_vmem [thread:$0]  %s28, 896, %s30, [#allocation8], 128, 128, 8
    $region5: #{tpu_custom_call.1} parent=1 // pred_fallthru
      _
    // Predicated region
    $region6: #{tpu_custom_call.1} parent=1 // pred_check
      _
    $region7: #{tpu_custom_call.1} parent=1 // pred_check_branch
      %37 = sbr.rel (0) target = $region9
    $region8: #{tpu_custom_call.1} parent=1 // pred_region
      %39 = dma.done [#allocation8], 896
    $region9: #{tpu_custom_call.1} parent=1 // pred_fallthru
      _
    loop: start=0, step=1, limit=128
    $region10: #{tpu_custom_call.1} parent=1 // loop_pre_header
      _
    $region11: #{tpu_custom_call.1} parent=1 // loop_header
      %s41 = sphi 0, %s45
      %p42 = scmp.ge.s32.totalorder %s41, 128
    $region12: #{tpu_custom_call.1} parent=1 // loop_header_branch
      %44 = sbr.rel (%p42) target = $region16
    $region13: #{tpu_custom_call.1} parent=1 // loop_body
      %s46 = smul.u32 0, 128
      %s47 = sadd.s32 %s46, %s41
      %s48 = smul.u32 %s47, 8
      %s49 = sld [smem:[#allocation5 + %s48]]
      %p50 = scmp.ne.s32.totalorder %s49, 0
      %s51 = scalar_select %p50, 1, 0
      %s52 = scvt.s32.f32 %s51
      %s53 = scalar_lea.vmem [#allocation7], %s49
      %v54 = vld [vmem:[%s53] sm:$0x1]
      %v55 = vstv %s52
      %v56 = vmul.f32 %v54, %v55
      %v57 = vadd.f32 %v56, 0.0
      %s58 = sadd.f32 %s52, 0.0
      %s59 = sadd.s32 %s48, 1
      %s60 = sld [smem:[#allocation5 + %s59]]
      %p61 = scmp.ne.s32.totalorder %s60, 0
      %s62 = scalar_select %p61, 1, 0
      %s63 = scvt.s32.f32 %s62
      %s64 = scalar_lea.vmem [#allocation7], %s60
      %v65 = vld [vmem:[%s64] sm:$0x1]
      %v66 = vstv %s63
      %v67 = vmul.f32 %v65, %v66
      %v68 = vadd.f32 %v57, %v67
      %s69 = sadd.f32 %s58, %s63
      %s70 = sadd.s32 %s48, 2
      %s71 = sld [smem:[#allocation5 + %s70]]
      %p72 = scmp.ne.s32.totalorder %s71, 0
      %s73 = scalar_select %p72, 1, 0
      %s74 = scvt.s32.f32 %s73
      %s75 = scalar_lea.vmem [#allocation7], %s71
      %v76 = vld [vmem:[%s75] sm:$0x1]
      %v77 = vstv %s74
      %v78 = vmul.f32 %v76, %v77
      %v79 = vadd.f32 %v68, %v78
      %s80 = sadd.f32 %s69, %s74
      %s81 = sadd.s32 %s48, 3
      %s82 = sld [smem:[#allocation5 + %s81]]
      %p83 = scmp.ne.s32.totalorder %s82, 0
      %s84 = scalar_select %p83, 1, 0
      %s85 = scvt.s32.f32 %s84
      %s86 = scalar_lea.vmem [#allocation7], %s82
      %v87 = vld [vmem:[%s86] sm:$0x1]
      %v88 = vstv %s85
      %v89 = vmul.f32 %v87, %v88
      %v90 = vadd.f32 %v79, %v89
      %s91 = sadd.f32 %s80, %s85
      %s92 = sadd.s32 %s48, 4
      %s93 = sld [smem:[#allocation5 + %s92]]
      %p94 = scmp.ne.s32.totalorder %s93, 0
      %s95 = scalar_select %p94, 1, 0
      %s96 = scvt.s32.f32 %s95
      %s97 = scalar_lea.vmem [#allocation7], %s93
      %v98 = vld [vmem:[%s97] sm:$0x1]
      %v99 = vstv %s96
      %v100 = vmul.f32 %v98, %v99
      %v101 = vadd.f32 %v90, %v100
      %s102 = sadd.f32 %s91, %s96
      %s103 = sadd.s32 %s48, 5
      %s104 = sld [smem:[#allocation5 + %s103]]
      %p105 = scmp.ne.s32.totalorder %s104, 0
      %s106 = scalar_select %p105, 1, 0
      %s107 = scvt.s32.f32 %s106
      %s108 = scalar_lea.vmem [#allocation7], %s104
      %v109 = vld [vmem:[%s108] sm:$0x1]
      %v110 = vstv %s107
      %v111 = vmul.f32 %v109, %v110
      %v112 = vadd.f32 %v101, %v111
      %s113 = sadd.f32 %s102, %s107
      %s114 = sadd.s32 %s48, 6
      %s115 = sld [smem:[#allocation5 + %s114]]
      %p116 = scmp.ne.s32.totalorder %s115, 0
      %s117 = scalar_select %p116, 1, 0
      %s118 = scvt.s32.f32 %s117
      %s119 = scalar_lea.vmem [#allocation7], %s115
      %v120 = vld [vmem:[%s119] sm:$0x1]
      %v121 = vstv %s118
      %v122 = vmul.f32 %v120, %v121
      %v123 = vadd.f32 %v112, %v122
      %s124 = sadd.f32 %s113, %s118
      %s125 = sadd.s32 %s48, 7
      %s126 = sld [smem:[#allocation5 + %s125]]
      %p127 = scmp.ne.s32.totalorder %s126, 0
      %s128 = scalar_select %p127, 1, 0
      %s129 = scvt.s32.f32 %s128
      %s130 = scalar_lea.vmem [#allocation7], %s126
      %v131 = vld [vmem:[%s130] sm:$0x1]
      %v132 = vstv %s129
      %v133 = vmul.f32 %v131, %v132
      %v134 = vadd.f32 %v123, %v133
      %s135 = sadd.f32 %s124, %s129
      %s136 = smax.f32 %s135, 1.0
      %v137 = vstv %s136
      %v138 = vrcp.pop %v137
      %v139 = vmul.f32 %v137, %v138
      %v140 = vsub.f32 1.0, %v139
      %v141 = vmul.f32 %v138, %v140
      %v142 = vadd.f32 %v138, %v141
      %vm143 = vweird.f32 %v137
      %vm144 = vweird.f32 %v138
      %vm145 = vmor %vm143, %vm144
      %v146 = vsel %vm145, %v138, %v142
      %v147 = vand.u32 2147483647, %v137
      %vm148 = vcmp.eq.f32.partialorder %v147, 8.507059e+37
      %v149 = vand.u32 %v137, 2147483648
      %v150 = vor.u32 1.1754944e-38, %v149
      %v151 = vsel %vm148, %v150, %v146
      %v152 = vmul.f32 %v134, %v151
      %s153 = scalar_lea.vmem [#allocation2], %s41
      %154 = vst [vmem:[%s153] sm:$0x1] %v152
      %s155 = sld [smem:[#allocation6 + %s47]]
      %s156 = scalar_lea.vmem [#allocation7], %s155
      %v157 = vld [vmem:[%s156] sm:$0x1]
      %s158 = scalar_lea.vmem [#allocation3], %s41
      %159 = vst [vmem:[%s158] sm:$0x1] %v157
    $region14: #{tpu_custom_call.1} parent=1 // loop_footer
      %s45 = sadd.s32 1, %s41
    $region15: #{tpu_custom_call.1} parent=1 // loop_footer_branch
      %40 = sbr.rel target = $region11
    $region16: #{tpu_custom_call.1} parent=1 // loop_exit
      _
    %v160 = vld [vmem:[#allocation2] sm:$0xff]
    %v161 = vld [vmem:[#allocation2 + $0x8] sm:$0xff]
    %v162 = vld [vmem:[#allocation2 + $0x10] sm:$0xff]
    %v163 = vld [vmem:[#allocation2 + $0x18] sm:$0xff]
    %v164 = vld [vmem:[#allocation2 + $0x20] sm:$0xff]
    %v165 = vld [vmem:[#allocation2 + $0x28] sm:$0xff]
    %v166 = vld [vmem:[#allocation2 + $0x30] sm:$0xff]
    %v167 = vld [vmem:[#allocation2 + $0x38] sm:$0xff]
    %v168 = vld [vmem:[#allocation2 + $0x40] sm:$0xff]
    %v169 = vld [vmem:[#allocation2 + $0x48] sm:$0xff]
    %v170 = vld [vmem:[#allocation2 + $0x50] sm:$0xff]
    %v171 = vld [vmem:[#allocation2 + $0x58] sm:$0xff]
    %v172 = vld [vmem:[#allocation2 + $0x60] sm:$0xff]
    %v173 = vld [vmem:[#allocation2 + $0x68] sm:$0xff]
    %v174 = vld [vmem:[#allocation2 + $0x70] sm:$0xff]
    %v175 = vld [vmem:[#allocation2 + $0x78] sm:$0xff]
    %v176 = vld [vmem:[#allocation3] sm:$0xff]
    %v177 = vld [vmem:[#allocation3 + $0x8] sm:$0xff]
    %v178 = vld [vmem:[#allocation3 + $0x10] sm:$0xff]
    %v179 = vld [vmem:[#allocation3 + $0x18] sm:$0xff]
    %v180 = vld [vmem:[#allocation3 + $0x20] sm:$0xff]
    %v181 = vld [vmem:[#allocation3 + $0x28] sm:$0xff]
    %v182 = vld [vmem:[#allocation3 + $0x30] sm:$0xff]
    %v183 = vld [vmem:[#allocation3 + $0x38] sm:$0xff]
    %v184 = vld [vmem:[#allocation3 + $0x40] sm:$0xff]
    %v185 = vld [vmem:[#allocation3 + $0x48] sm:$0xff]
    %v186 = vld [vmem:[#allocation3 + $0x50] sm:$0xff]
    %v187 = vld [vmem:[#allocation3 + $0x58] sm:$0xff]
    %v188 = vld [vmem:[#allocation3 + $0x60] sm:$0xff]
    %v189 = vld [vmem:[#allocation3 + $0x68] sm:$0xff]
    %v190 = vld [vmem:[#allocation3 + $0x70] sm:$0xff]
    %v191 = vld [vmem:[#allocation3 + $0x78] sm:$0xff]
    %v192 = vmul.f32 %v160, %v176
    %v193 = vmul.f32 %v161, %v177
    %v194 = vmul.f32 %v162, %v178
    %v195 = vmul.f32 %v163, %v179
    %v196 = vmul.f32 %v164, %v180
    %v197 = vmul.f32 %v165, %v181
    %v198 = vmul.f32 %v166, %v182
    %v199 = vmul.f32 %v167, %v183
    %v200 = vmul.f32 %v168, %v184
    %v201 = vmul.f32 %v169, %v185
    %v202 = vmul.f32 %v170, %v186
    %v203 = vmul.f32 %v171, %v187
    %v204 = vmul.f32 %v172, %v188
    %v205 = vmul.f32 %v173, %v189
    %v206 = vmul.f32 %v174, %v190
    %v207 = vmul.f32 %v175, %v191
    %208 = vadd.xlane.f32.xlu0 %v192
    %v209 = vpop.xlane.xlu0 %208
    %210 = vadd.xlane.f32.xlu0 %v193
    %v211 = vpop.xlane.xlu0 %210
    %212 = vadd.xlane.f32.xlu0 %v194
    %v213 = vpop.xlane.xlu0 %212
    %214 = vadd.xlane.f32.xlu0 %v195
    %v215 = vpop.xlane.xlu0 %214
    %216 = vadd.xlane.f32.xlu0 %v196
    %v217 = vpop.xlane.xlu0 %216
    %218 = vadd.xlane.f32.xlu0 %v197
    %v219 = vpop.xlane.xlu0 %218
    %220 = vadd.xlane.f32.xlu0 %v198
    %v221 = vpop.xlane.xlu0 %220
    %222 = vadd.xlane.f32.xlu0 %v199
    %v223 = vpop.xlane.xlu0 %222
    %224 = vadd.xlane.f32.xlu0 %v200
    %v225 = vpop.xlane.xlu0 %224
    %226 = vadd.xlane.f32.xlu0 %v201
    %v227 = vpop.xlane.xlu0 %226
    %228 = vadd.xlane.f32.xlu0 %v202
    %v229 = vpop.xlane.xlu0 %228
    %230 = vadd.xlane.f32.xlu0 %v203
    %v231 = vpop.xlane.xlu0 %230
    %232 = vadd.xlane.f32.xlu0 %v204
    %v233 = vpop.xlane.xlu0 %232
    %234 = vadd.xlane.f32.xlu0 %v205
    %v235 = vpop.xlane.xlu0 %234
    %236 = vadd.xlane.f32.xlu0 %v206
    %v237 = vpop.xlane.xlu0 %236
    %238 = vadd.xlane.f32.xlu0 %v207
    %v239 = vpop.xlane.xlu0 %238
    %v256 = vlaneseq
    %v257 = vand.u32 %v256, 127
    %v258 = vperm.slane %v209, %v257
    %v259 = vadd.s32 %v257, 4294967288
    %v260 = vperm.slane %v211, %v259
    %vm261 = vcmask 130112
    %v262 = vsel %vm261, %v260, %v258
    %v263 = vadd.s32 %v257, 4294967280
    %v264 = vperm.slane %v213, %v263
    %vm265 = vcmask 195712
    %v266 = vsel %vm265, %v264, %v262
    %v267 = vadd.s32 %v257, 4294967272
    %v268 = vperm.slane %v215, %v267
    %vm269 = vcmask 261312
    %v270 = vsel %vm269, %v268, %v266
    %v271 = vadd.s32 %v257, 4294967264
    %v272 = vperm.slane %v217, %v271
    %vm273 = vcmask 326912
    %v274 = vsel %vm273, %v272, %v270
    %v275 = vadd.s32 %v257, 4294967256
    %v276 = vperm.slane %v219, %v275
    %vm277 = vcmask 392512
    %v278 = vsel %vm277, %v276, %v274
    %v279 = vadd.s32 %v257, 4294967248
    %v280 = vperm.slane %v221, %v279
    %vm281 = vcmask 458112
    %v282 = vsel %vm281, %v280, %v278
    %v283 = vadd.s32 %v257, 4294967240
    %v284 = vperm.slane %v223, %v283
    %vm285 = vcmask 523712
    %v286 = vsel %vm285, %v284, %v282
    %v287 = vadd.s32 %v257, 4294967232
    %v288 = vperm.slane %v225, %v287
    %vm289 = vcmask 589312
    %v290 = vsel %vm289, %v288, %v286
    %v291 = vadd.s32 %v257, 4294967224
    %v292 = vperm.slane %v227, %v291
    %vm293 = vcmask 654912
    %v294 = vsel %vm293, %v292, %v290
    %v295 = vadd.s32 %v257, 4294967216
    %v296 = vperm.slane %v229, %v295
    %vm297 = vcmask 720512
    %v298 = vsel %vm297, %v296, %v294
    %v299 = vadd.s32 %v257, 4294967208
    %v300 = vperm.slane %v231, %v299
    %vm301 = vcmask 786112
    %v302 = vsel %vm301, %v300, %v298
    %v303 = vadd.s32 %v257, 4294967200
    %v304 = vperm.slane %v233, %v303
    %vm305 = vcmask 851712
    %v306 = vsel %vm305, %v304, %v302
    %v307 = vadd.s32 %v257, 4294967192
    %v308 = vperm.slane %v235, %v307
    %vm309 = vcmask 917312
    %v310 = vsel %vm309, %v308, %v306
    %v311 = vadd.s32 %v257, 4294967184
    %v312 = vperm.slane %v237, %v311
    %vm313 = vcmask 982912
    %v314 = vsel %vm313, %v312, %v310
    %v315 = vadd.s32 %v257, 4294967176
    %v316 = vperm.slane %v239, %v315
    %vm317 = vcmask 1048512
    %v318 = vsel %vm317, %v316, %v314
    %320 = vst [vmem:[#allocation10] sm:$0x1] %v318
    // Predicated region
    $region17: #{tpu_custom_call.1} parent=1 // pred_check
      _
    $region18: #{tpu_custom_call.1} parent=1 // pred_check_branch
      %322 = sbr.rel (0) target = $region20
    $region19: #{tpu_custom_call.1} parent=1 // pred_region
      %324 = vsyncadd [#allocation9], 0
      %s326 = sshll.u32 [#allocation10], 4
      %s327 = int_to_ptr.vmem [resolvable:$true] %s326
      %s328 = sshll.u32 %s3, 4
      %s329 = int_to_ptr.hbm [resolvable:$true] %s328
      %331 = dma.vmem_to_hbm [thread:$0]  %s327, 16, %s329, [#allocation9]
    $region20: #{tpu_custom_call.1} parent=1 // pred_fallthru
      _
    // Predicated region
    $region21: #{tpu_custom_call.1} parent=1 // pred_check
      _
    $region22: #{tpu_custom_call.1} parent=1 // pred_check_branch
      %333 = sbr.rel (0) target = $region24
    $region23: #{tpu_custom_call.1} parent=1 // pred_region
      %335 = dma.done [#allocation9], 16
    $region24: #{tpu_custom_call.1} parent=1 // pred_fallthru
      _
    %336 = vsyncpa [#allocation8], 1
    %337 = vsyncpa [#allocation9], 1

</llo_original>
